<compile_context>
chip_gen: v7x
topology: tpu7x:2x2x1
jax: 0.10.0
libtpu: 0.0.40
codegen_flags: <defaults>
</compile_context>

<pallas_src>
import functools

import jax
import jax.numpy as jnp
from jax.experimental import pallas as pl
from jax.experimental.pallas import tpu as pltpu

_SUBLANE = 8
_LANE = 128
# 8192 rows x 128 lanes x 4 B = 4 MiB per input block (f32): amortizes the
# ~0.35 us/grid-step overhead against v7x's ~3.2 TB/s HBM while still fitting
# 16 MiB of double-buffered inputs under the explicit VMEM limit below.
_MAX_BLOCK_ROWS = 8192
# 256 rows x 128 lanes x 4 B = 128 KiB per chunk per input inside the
# accumulation loop (a handful of vregs live at a time).
_CHUNK_ROWS = 256
_VMEM_LIMIT_BYTES = 40 << 20


def _round_up(x: int, m: int) -> int:
    return ((x + m - 1) // m) * m


def _sublane_multiple(dtype) -> int:
    # (sublane, 128) tiling granularity: 8 for 32-bit, 16 for 16-bit,
    # 32 for 8-bit dtypes.
    itemsize = jnp.dtype(dtype).itemsize
    return _SUBLANE * max(1, 4 // itemsize)


def _mae_partial_kernel(p_ref, t_ref, o_ref, *, block_rows, chunk_rows,
                        total_rows, needs_mask):
    n_chunks = block_rows // chunk_rows
    unroll = min(8, n_chunks)

    def accumulate(masked):
        def body(i, acc):
            r0 = pl.multiple_of(i * chunk_rows, chunk_rows)
            p = p_ref[pl.ds(r0, chunk_rows), :].astype(jnp.float32)
            t = t_ref[pl.ds(r0, chunk_rows), :].astype(jnp.float32)
            d = jnp.abs(p - t)
            if masked:
                # Rows past the real row count hold unspecified data in the
                # padded partial block; select them away before summing.
                row0 = pl.program_id(0) * block_rows + r0
                rows = row0 + jax.lax.broadcasted_iota(jnp.int32, d.shape, 0)
                d = jnp.where(rows < total_rows, d, 0.0)
            # Fold (chunk_rows, 128) into an (8, 128) vreg with VPU adds only.
            return acc + d.reshape(chunk_rows // _SUBLANE, _SUBLANE, _LANE).sum(axis=0)

        init = jnp.zeros((_SUBLANE, _LANE), jnp.float32)
        return jax.lax.fori_loop(0, n_chunks, body, init, unroll=unroll)

    if not needs_mask:
        o_ref[0] = accumulate(False)
    else:
        is_last = pl.program_id(0) == pl.num_programs(0) - 1

        @pl.when(jnp.logical_not(is_last))
        def _():
            o_ref[0] = accumulate(False)

        @pl.when(is_last)
        def _():
            o_ref[0] = accumulate(True)


def mae_loss(predicted: jax.Array, target: jax.Array) -> jax.Array:
    """mean(|predicted - target|), computed with a Pallas TPU kernel."""
    assert predicted.shape == target.shape, "shapes must match"
    n_elems = predicted.size
    if n_elems == 0:
        # torch.mean of an empty tensor is nan.
        return jnp.float32(jnp.nan)

    p_flat = predicted.reshape(-1)
    t_flat = target.reshape(-1)

    # Handle the (rare) non-128-multiple tail in plain jnp instead of padding
    # full HBM copies of both inputs.
    main_elems = (n_elems // _LANE) * _LANE
    tail_elems = n_elems - main_elems

    tail_sum = jnp.float32(0.0)
    if tail_elems:
        tail_sum = jnp.sum(
            jnp.abs(p_flat[main_elems:].astype(jnp.float32)
                    - t_flat[main_elems:].astype(jnp.float32)))

    if main_elems == 0:
        total = tail_sum
    else:
        total_rows = main_elems // _LANE
        p2 = p_flat[:main_elems].reshape(total_rows, _LANE)
        t2 = t_flat[:main_elems].reshape(total_rows, _LANE)

        sub_mult = max(_sublane_multiple(p2.dtype), _sublane_multiple(t2.dtype))
        if total_rows <= _CHUNK_ROWS:
            # Single small block; one chunk covers it.
            block_rows = _round_up(total_rows, sub_mult)
            chunk_rows = block_rows
        else:
            # _CHUNK_ROWS (256) is a multiple of every dtype's sublane tile,
            # so rounding the block to it keeps the layout legal for all dtypes.
            block_rows = min(_MAX_BLOCK_ROWS, _round_up(total_rows, _CHUNK_ROWS))
            chunk_rows = _CHUNK_ROWS

        num_blocks = pl.cdiv(total_rows, block_rows)
        needs_mask = (total_rows % block_rows) != 0

        kernel = functools.partial(
            _mae_partial_kernel,
            block_rows=block_rows,
            chunk_rows=chunk_rows,
            total_rows=total_rows,
            needs_mask=needs_mask,
        )

        in_bytes = main_elems * (jnp.dtype(p2.dtype).itemsize
                                 + jnp.dtype(t2.dtype).itemsize)
        out_bytes = num_blocks * _SUBLANE * _LANE * 4
        cost = pl.CostEstimate(
            flops=3 * main_elems,           # sub + abs + add per element
            transcendentals=0,
            bytes_accessed=in_bytes + out_bytes,
        )

        partials = pl.pallas_call(
            kernel,
            out_shape=jax.ShapeDtypeStruct((num_blocks, _SUBLANE, _LANE),
                                           jnp.float32),
            grid_spec=pltpu.PrefetchScalarGridSpec(
                num_scalar_prefetch=0,
                grid=(num_blocks,),
                in_specs=[
                    pl.BlockSpec((block_rows, _LANE), lambda i: (i, 0)),
                    pl.BlockSpec((block_rows, _LANE), lambda i: (i, 0)),
                ],
                # Each grid step owns its own (1, 8, 128) output slab -> the
                # grid axis is truly parallel.
                out_specs=pl.BlockSpec((1, _SUBLANE, _LANE),
                                       lambda i: (i, 0, 0)),
            ),
            compiler_params=pltpu.CompilerParams(
                dimension_semantics=("parallel",),
                vmem_limit_bytes=_VMEM_LIMIT_BYTES,
            ),
            cost_estimate=cost,
        )(p2, t2)

        # Tiny epilogue reduce over num_blocks * 1024 partials.
        total = jnp.sum(partials) + tail_sum

    return (total / jnp.float32(n_elems)).astype(jnp.float32)


if __name__ == "__main__":
    key = jax.random.PRNGKey(0)
    k1, k2 = jax.random.split(key)

    # Small shapes consistent with a typical NCHW prediction/target pair.
    predicted = jax.random.normal(k1, (2, 4, 16, 16), dtype=jnp.float32)
    target = jax.random.normal(k2, (2, 4, 16, 16), dtype=jnp.float32)

    loss = mae_loss(predicted, target)
    loss = jax.block_until_ready(loss)

    # Cross-check against the plain-JAX reference.
    ref = jnp.mean(jnp.abs(predicted - target))
    assert jnp.allclose(loss, ref, rtol=1e-6, atol=1e-6), (loss, ref)

    print("KERNEL_OK")
</pallas_src>

<mosaic_0001>
module attributes {stable_mosaic.version = 11 : i64} {
  func.func @_mae_partial_kernel(%arg0: i32, %arg1: memref<16x128xf32, #tpu.memory_space<vmem>>, %arg2: memref<16x128xf32, #tpu.memory_space<vmem>>, %arg3: memref<1x8x128xf32, #tpu.memory_space<vmem>>) attributes {dimension_semantics = [#tpu.dimension_semantics<parallel>], iteration_bounds = array<i64: 1>, scalar_prefetch = 0 : i64, scratch_operands = 0 : i64, tpu.core_type = #tpu.core_type<tc>, window_params = [{transform_indices = @transform_0, window_bounds = array<i64: 16, 128>}, {transform_indices = @transform_1, window_bounds = array<i64: 16, 128>}, {transform_indices = @transform_2, window_bounds = array<i64: 1, 8, 128>}]} {
    %cst = arith.constant 0.000000e+00 : f32
    %0 = vector.broadcast %cst : f32 to vector<8x128xf32>
    %c0_i32 = arith.constant 0 : i32
    %c16_i32 = arith.constant 16 : i32
    %1 = arith.muli %c0_i32, %c16_i32 : i32
    %2 = tpu.assume_multiple %1, 16 : i32
    %3 = arith.index_cast %2 : i32 to index
    %c0 = arith.constant 0 : index
    %4 = vector.load %arg1[%3, %c0] : memref<16x128xf32, #tpu.memory_space<vmem>>, vector<16x128xf32>
    %5 = arith.index_cast %2 : i32 to index
    %c0_0 = arith.constant 0 : index
    %6 = vector.load %arg2[%5, %c0_0] : memref<16x128xf32, #tpu.memory_space<vmem>>, vector<16x128xf32>
    %7 = arith.subf %4, %6 : vector<16x128xf32>
    %8 = math.absf %7 : vector<16x128xf32>
    %9 = vector.shape_cast %8 : vector<16x128xf32> to vector<2x8x128xf32>
    %cst_1 = arith.constant dense<0.000000e+00> : vector<8x128xf32>
    %10 = vector.multi_reduction <add>, %9, %cst_1 [0] : vector<2x8x128xf32> to vector<8x128xf32>
    %11 = arith.addf %0, %10 : vector<8x128xf32>
    %c1_i32 = arith.constant 1 : i32
    %c0_2 = arith.constant 0 : index
    %c0_3 = arith.constant 0 : index
    %c0_4 = arith.constant 0 : index
    %12 = vector.load %arg3[%c0_2, %c0_3, %c0_4] : memref<1x8x128xf32, #tpu.memory_space<vmem>>, vector<1x8x128xf32>
    %13 = vector.shape_cast %12 : vector<1x8x128xf32> to vector<8x128xf32>
    %14 = vector.shape_cast %11 : vector<8x128xf32> to vector<1x8x128xf32>
    tpu.vector_store %arg3[%c0_2, %c0_3, %c0_4], %14 {strides = array<i32>} : memref<1x8x128xf32, #tpu.memory_space<vmem>>, vector<1x8x128xf32>,
    return
  }
  func.func @transform_0(%arg0: i32) -> (i32, i32) {
    %c0_i32 = arith.constant 0 : i32
    %c0_i32_0 = arith.constant 0 : i32
    return %arg0, %c0_i32 : i32, i32
  }
  func.func @transform_1(%arg0: i32) -> (i32, i32) {
    %c0_i32 = arith.constant 0 : i32
    %c0_i32_0 = arith.constant 0 : i32
    return %arg0, %c0_i32 : i32, i32
  }
  func.func @transform_2(%arg0: i32) -> (i32, i32, i32) {
    %c0_i32 = arith.constant 0 : i32
    %c0_i32_0 = arith.constant 0 : i32
    %c0_i32_1 = arith.constant 0 : i32
    return %arg0, %c0_i32, %c0_i32_0 : i32, i32, i32
  }
}

</mosaic_0001>

<llo_original>
// kernel: tpu_custom_call.1
$region0: #{tpu_custom_call.1}
  #allocation0 [shape = 'u32[]', space=smem, size = 0x4, offset = 0x4, fixed_abs, tag = 'smem constant byte address 0x4 - core index']
  #allocation1 [shape = 'u32[144,128]{1,0:T(1,128)}', space=vmem, size = 0x12000, scoped, tag = 'internal scratch']
  %s0 = inlined_call_operand.hbm [shape: f32[16,128], index: 0, kind: input, shape index: {}]
  %s1 = inlined_call_operand.hbm [shape: f32[16,128], index: 1, kind: input, shape index: {}]
  %s2 = inlined_call_operand.hbm [shape: f32[1,8,128], index: 2, kind: output, shape index: {}]
  %s3 = sld [smem:[#allocation0]]
  $region26: #{tpu_custom_call.1} parent=0
    _
  %s5 = ssub.s32 1, %s3
  %s6 = scalar_select 0, %s5, %s3
  $region1: #{tpu_custom_call.1} parent=0
    #allocation2 [shape = 'u8[8192]{0}', space=vmem, size = 0x2000, scoped, tag = 'input window, operand 0, single buffered']
    #allocation3 [shape = 's32[1]{0}', space=sflag, size = 0x4, scoped, tag = 'scoped memory for tpu_custom_call.1']
    #allocation4 [shape = 's32[1]{0}', space=sflag, size = 0x4, scoped, tag = 'scoped memory for tpu_custom_call.1']
    #allocation5 [shape = 'u8[8192]{0}', space=vmem, size = 0x2000, scoped, tag = 'input window, operand 1, single buffered']
    #allocation6 [shape = 's32[1]{0}', space=sflag, size = 0x4, scoped, tag = 'scoped memory for tpu_custom_call.1']
    #allocation7 [shape = 'u8[4096]{0}', space=vmem, size = 0x1000, scoped, tag = 'output window, operand 0, single buffered']
    %7 = vsyncpa [#allocation3], 0
    %8 = vsyncpa [#allocation6], 0
    %9 = vsyncpa [#allocation4], 0
    // Predicated region
    $region2: #{tpu_custom_call.1} parent=1 // pred_check
      _
    $region3: #{tpu_custom_call.1} parent=1 // pred_check_branch
      %11 = sbr.rel (0) target = $region5
    $region4: #{tpu_custom_call.1} parent=1 // pred_region
      %s13 = ssub.s32 256, 256
      %14 = vsyncadd [#allocation3], %s13
      %s15 = sshll.u32 [#allocation2], 4
      %s16 = int_to_ptr.vmem [resolvable:$true] %s15
      %21 = dma.hbm_to_vmem [thread:$0]  %s0, 256, %s16, [#allocation3], 128, 128, 8
    $region5: #{tpu_custom_call.1} parent=1 // pred_fallthru
      _
    // Predicated region
    $region6: #{tpu_custom_call.1} parent=1 // pred_check
      _
    $region7: #{tpu_custom_call.1} parent=1 // pred_check_branch
      %23 = sbr.rel (0) target = $region9
    $region8: #{tpu_custom_call.1} parent=1 // pred_region
      %s25 = ssub.s32 256, 256
      %26 = vsyncadd [#allocation6], %s25
      %s27 = sshll.u32 [#allocation5], 4
      %s28 = int_to_ptr.vmem [resolvable:$true] %s27
      %33 = dma.hbm_to_vmem [thread:$0]  %s1, 256, %s28, [#allocation6], 128, 128, 8
    $region9: #{tpu_custom_call.1} parent=1 // pred_fallthru
      _
    // Predicated region
    $region10: #{tpu_custom_call.1} parent=1 // pred_check
      _
    $region11: #{tpu_custom_call.1} parent=1 // pred_check_branch
      %35 = sbr.rel (0) target = $region13
    $region12: #{tpu_custom_call.1} parent=1 // pred_region
      %36 = dma.done [#allocation3], 256
    $region13: #{tpu_custom_call.1} parent=1 // pred_fallthru
      _
    // Predicated region
    $region14: #{tpu_custom_call.1} parent=1 // pred_check
      _
    $region15: #{tpu_custom_call.1} parent=1 // pred_check_branch
      %38 = sbr.rel (0) target = $region17
    $region16: #{tpu_custom_call.1} parent=1 // pred_region
      %39 = dma.done [#allocation6], 256
    $region17: #{tpu_custom_call.1} parent=1 // pred_fallthru
      _
    %v40 = vld [vmem:[#allocation2] sm:$0xff]
    %v41 = vld [vmem:[#allocation2 + $0x8] sm:$0xff]
    %v42 = vld [vmem:[#allocation5] sm:$0xff]
    %v43 = vld [vmem:[#allocation5 + $0x8] sm:$0xff]
    %v44 = vsub.f32 %v40, %v42
    %v45 = vsub.f32 %v41, %v43
    %v46 = vand.u32 2147483647, %v44
    %v47 = vand.u32 2147483647, %v45
    %v48 = vadd.f32 %v46, %v47
    %v49 = vadd.f32 %v48, 0.0
    %50 = vst [vmem:[#allocation7] sm:$0xff] %v49
    // Predicated region
    $region18: #{tpu_custom_call.1} parent=1 // pred_check
      _
    $region19: #{tpu_custom_call.1} parent=1 // pred_check_branch
      %52 = sbr.rel (0) target = $region21
    $region20: #{tpu_custom_call.1} parent=1 // pred_region
      %s54 = ssub.s32 128, 128
      %55 = vsyncadd [#allocation4], %s54
      %s57 = sshll.u32 [#allocation7], 4
      %s58 = int_to_ptr.vmem [resolvable:$true] %s57
      %60 = dma.vmem_to_hbm [thread:$0]  %s58, 128, %s2, [#allocation4]
    $region21: #{tpu_custom_call.1} parent=1 // pred_fallthru
      _
    // Predicated region
    $region22: #{tpu_custom_call.1} parent=1 // pred_check
      _
    $region23: #{tpu_custom_call.1} parent=1 // pred_check_branch
      %62 = sbr.rel (0) target = $region25
    $region24: #{tpu_custom_call.1} parent=1 // pred_region
      %63 = dma.done [#allocation4], 128
    $region25: #{tpu_custom_call.1} parent=1 // pred_fallthru
      _
    %64 = vsyncpa [#allocation3], 1
    %65 = vsyncpa [#allocation6], 1
    %66 = vsyncpa [#allocation4], 1

</llo_original>
